<compile_context>
chip_gen: v7x
topology: tpu7x:2x2x1
jax: 0.10.0
libtpu: 0.0.40
codegen_flags: <defaults>
</compile_context>

<pallas_src>
import jax
import jax.numpy as jnp
from jax.experimental import pallas as pl
from jax.experimental.pallas import tpu as pltpu


def ffm_kernel(left_ref, right_ref, out_ref):
    # left_ref / right_ref: (K, TILE_B) f32 -- K = P*D + F + 1 feature rows,
    # batch on the lane axis (lane-dense). out_ref: (1, TILE_B).
    prod = left_ref[...] * right_ref[...]             # VPU elementwise
    z = jnp.sum(prod, axis=0, keepdims=True)          # one XLU reduce -> (1, TILE_B)
    out_ref[...] = jax.nn.sigmoid(z)                  # lane-dense, unmasked store


def _pick_tile_b(batch, k_rows, budget_bytes=12 << 20, cap=2048):
    """Largest multiple-of-128 batch tile whose double-buffered left/right f32
    tiles fit a conservative VMEM budget (safe on v5e/v6e/v7x defaults)."""
    per_col = 2 * 2 * k_rows * 4                      # 2 inputs x 2 buffers x f32
    fit = max(128, (budget_bytes // per_col) // 128 * 128)
    need = pl.cdiv(batch, 128) * 128
    return int(min(cap, fit, need))


def ffm_forward(x, w_linear, w_cross, bias, offsets):
    """x: (B, F) int32 field indices. Returns (B,) f32 predictions."""
    B, F = x.shape
    D = w_cross.shape[-1]
    xi = x + offsets[None, :]                         # (B, F) global indices

    # --- glue: gather ONLY the pairs used by the model (plain JAX) ---------
    # cross = sum_{i<j} < w_cross[j, xi[:, i]] , w_cross[i, xi[:, j]] >
    pairs = [(i, j) for i in range(F) for j in range(i + 1, F)]
    P = len(pairs)
    lt = jnp.array([j for i, j in pairs], dtype=jnp.int32)   # left: table j
    lf = jnp.array([i for i, j in pairs], dtype=jnp.int32)   # left: field i
    rt = jnp.array([i for i, j in pairs], dtype=jnp.int32)   # right: table i
    rf = jnp.array([j for i, j in pairs], dtype=jnp.int32)   # right: field j
    left = w_cross[lt, xi[:, lf], :].reshape(B, P * D)       # (B, P*D)
    right = w_cross[rt, xi[:, rf], :].reshape(B, P * D)      # (B, P*D)

    lin = w_linear[xi, 0]                                    # (B, F)
    bias_col = jnp.broadcast_to(bias.reshape(1, 1), (B, 1))  # (B, 1)

    # Fold linear term + bias into the same fused multiply-reduce:
    #   z[b] = sum_k left_aug[b, k] * right_aug[b, k]
    left_aug = jnp.concatenate([left, lin, bias_col], axis=1).astype(jnp.float32)
    right_aug = jnp.concatenate(
        [right, jnp.ones((B, F + 1), jnp.float32)], axis=1)
    K = P * D + F + 1

    # Batch on lanes: transpose to (K, B) and pad batch to a tile multiple.
    tile_b = _pick_tile_b(B, K)
    b_pad = pl.cdiv(B, tile_b) * tile_b
    num_tiles = b_pad // tile_b
    pad = ((0, 0), (0, b_pad - B))
    left_t = jnp.pad(left_aug.T, pad)                        # (K, B_pad)
    right_t = jnp.pad(right_aug.T, pad)                      # (K, B_pad)

    out = pl.pallas_call(
        ffm_kernel,
        out_shape=jax.ShapeDtypeStruct((1, b_pad), jnp.float32),
        grid_spec=pltpu.PrefetchScalarGridSpec(
            num_scalar_prefetch=0,
            grid=(num_tiles,),
            in_specs=[
                pl.BlockSpec((K, tile_b), lambda i: (0, i)),
                pl.BlockSpec((K, tile_b), lambda i: (0, i)),
            ],
            out_specs=pl.BlockSpec((1, tile_b), lambda i: (0, i)),
        ),
        compiler_params=pltpu.CompilerParams(
            dimension_semantics=("parallel",)),
    )(left_t, right_t)
    return out[0, :B]                                        # (B,)


def ffm_reference(x, w_linear, w_cross, bias, offsets):
    """Pure-JAX reference mirroring the PyTorch forward exactly."""
    num_fields = x.shape[1]
    xi = x + offsets[None, :]
    emb = jnp.transpose(w_cross[:, xi, :], (1, 0, 2, 3))     # (B, F, F, D)
    B, F, _, D = emb.shape
    emb = emb.reshape(B, F * F, D)
    i1, i2 = [], []
    for i in range(num_fields):
        for j in range(i + 1, num_fields):
            i1.append(j * num_fields + i)
            i2.append(i * num_fields + j)
    cross = (emb[:, jnp.array(i1), :] * emb[:, jnp.array(i2), :]).sum(2).sum(
        1, keepdims=True)
    lin = w_linear[xi, 0].sum(axis=1, keepdims=True)
    out = jax.nn.sigmoid(lin + bias + cross)
    return out[:, 0]


if __name__ == "__main__":
    # Module configuration (synthetic, deterministic).
    field_dims = (8, 16, 12, 4)          # F = 4 fields
    embed_dim = 4                        # D = 4
    num_fields = len(field_dims)
    vocab = sum(field_dims)
    batch = 8

    key = jax.random.PRNGKey(0)
    k_lin, k_cross, k_x = jax.random.split(key, 3)

    # Parameters (matching __init__ shapes; weights ~ uniform(0, 0.005)).
    w_linear = jax.random.uniform(
        k_lin, (vocab, 1), jnp.float32, 0.0, 0.005)                        # Embedding(V, 1)
    w_cross = jax.random.uniform(
        k_cross, (num_fields, vocab, embed_dim), jnp.float32, 0.0, 0.005)  # F x Embedding(V, D)
    bias = jnp.zeros((1,), jnp.float32)

    offsets = jnp.array(
        (0,) + tuple(int(s) for s in jnp.cumsum(jnp.array(field_dims))[:-1]),
        dtype=jnp.int32)

    # Input: per-field categorical indices, each in [0, field_dims[f]).
    cols = []
    for f, fd in enumerate(field_dims):
        cols.append(
            jax.random.randint(jax.random.fold_in(k_x, f), (batch,), 0, fd,
                               dtype=jnp.int32))
    x = jnp.stack(cols, axis=1)                                            # (B, F) int32

    out = jax.block_until_ready(ffm_forward(x, w_linear, w_cross, bias, offsets))
    ref = jax.block_until_ready(ffm_reference(x, w_linear, w_cross, bias, offsets))

    assert out.shape == (batch,)
    assert jnp.allclose(out, ref, atol=1e-6, rtol=1e-6), (out, ref)
    print("KERNEL_OK")
</pallas_src>

<mosaic_0001>
module attributes {stable_mosaic.version = 11 : i64} {
  func.func @ffm_kernel(%arg0: i32, %arg1: memref<29x128xf32, #tpu.memory_space<vmem>>, %arg2: memref<29x128xf32, #tpu.memory_space<vmem>>, %arg3: memref<1x128xf32, #tpu.memory_space<vmem>>) attributes {dimension_semantics = [#tpu.dimension_semantics<parallel>], iteration_bounds = array<i64: 1>, scalar_prefetch = 0 : i64, scratch_operands = 0 : i64, tpu.core_type = #tpu.core_type<tc>, window_params = [{transform_indices = @transform_0, window_bounds = array<i64: 29, 128>}, {transform_indices = @transform_1, window_bounds = array<i64: 29, 128>}, {transform_indices = @transform_2, window_bounds = array<i64: 1, 128>}]} {
    %c0 = arith.constant 0 : index
    %c0_0 = arith.constant 0 : index
    %0 = vector.load %arg1[%c0, %c0_0] : memref<29x128xf32, #tpu.memory_space<vmem>>, vector<29x128xf32>
    %c0_1 = arith.constant 0 : index
    %c0_2 = arith.constant 0 : index
    %1 = vector.load %arg2[%c0_1, %c0_2] : memref<29x128xf32, #tpu.memory_space<vmem>>, vector<29x128xf32>
    %2 = arith.mulf %0, %1 : vector<29x128xf32>
    %cst = arith.constant dense<0.000000e+00> : vector<128xf32>
    %3 = vector.multi_reduction <add>, %2, %cst [0] : vector<29x128xf32> to vector<128xf32>
    %4 = vector.shape_cast %3 : vector<128xf32> to vector<1x128xf32>
    %5 = arith.negf %4 : vector<1x128xf32>
    %6 = math.exp %5 : vector<1x128xf32>
    %cst_3 = arith.constant 1.000000e+00 : f32
    %7 = vector.broadcast %cst_3 : f32 to vector<1x128xf32>
    %8 = arith.addf %7, %6 : vector<1x128xf32>
    %9 = arith.divf %7, %8 : vector<1x128xf32>
    %c0_4 = arith.constant 0 : index
    %c0_5 = arith.constant 0 : index
    %10 = vector.load %arg3[%c0_4, %c0_5] : memref<1x128xf32, #tpu.memory_space<vmem>>, vector<1x128xf32>
    tpu.vector_store %arg3[%c0_4, %c0_5], %9 {strides = array<i32>} : memref<1x128xf32, #tpu.memory_space<vmem>>, vector<1x128xf32>,
    return
  }
  func.func @transform_0(%arg0: i32) -> (i32, i32) {
    %c0_i32 = arith.constant 0 : i32
    %c0_i32_0 = arith.constant 0 : i32
    return %c0_i32, %arg0 : i32, i32
  }
  func.func @transform_1(%arg0: i32) -> (i32, i32) {
    %c0_i32 = arith.constant 0 : i32
    %c0_i32_0 = arith.constant 0 : i32
    return %c0_i32, %arg0 : i32, i32
  }
  func.func @transform_2(%arg0: i32) -> (i32, i32) {
    %c0_i32 = arith.constant 0 : i32
    %c0_i32_0 = arith.constant 0 : i32
    return %c0_i32, %arg0 : i32, i32
  }
}

</mosaic_0001>

<llo_original>
// kernel: tpu_custom_call.1
$region0: #{tpu_custom_call.1}
  #allocation0 [shape = 'u32[]', space=smem, size = 0x4, offset = 0x4, fixed_abs, tag = 'smem constant byte address 0x4 - core index']
  #allocation1 [shape = 'u32[144,128]{1,0:T(1,128)}', space=vmem, size = 0x12000, scoped, tag = 'internal scratch']
  %s0 = inlined_call_operand.hbm [shape: f32[29,128], index: 0, kind: input, shape index: {}]
  %s1 = inlined_call_operand.hbm [shape: f32[29,128], index: 1, kind: input, shape index: {}]
  %s2 = inlined_call_operand.hbm [shape: f32[1,128], index: 2, kind: output, shape index: {}]
  %s3 = sld [smem:[#allocation0]]
  $region26: #{tpu_custom_call.1} parent=0
    _
  %s5 = ssub.s32 1, %s3
  %s6 = scalar_select 0, %s5, %s3
  $region1: #{tpu_custom_call.1} parent=0
    #allocation2 [shape = 'u8[16384]{0}', space=vmem, size = 0x4000, scoped, tag = 'input window, operand 0, single buffered']
    #allocation3 [shape = 's32[1]{0}', space=sflag, size = 0x4, scoped, tag = 'scoped memory for tpu_custom_call.1']
    #allocation4 [shape = 's32[1]{0}', space=sflag, size = 0x4, scoped, tag = 'scoped memory for tpu_custom_call.1']
    #allocation5 [shape = 'u8[16384]{0}', space=vmem, size = 0x4000, scoped, tag = 'input window, operand 1, single buffered']
    #allocation6 [shape = 's32[1]{0}', space=sflag, size = 0x4, scoped, tag = 'scoped memory for tpu_custom_call.1']
    #allocation7 [shape = 'u8[512]{0}', space=vmem, size = 0x400, scoped, tag = 'output window, operand 0, single buffered']
    %7 = vsyncpa [#allocation3], 0
    %8 = vsyncpa [#allocation6], 0
    %9 = vsyncpa [#allocation4], 0
    // Predicated region
    $region2: #{tpu_custom_call.1} parent=1 // pred_check
      _
    $region3: #{tpu_custom_call.1} parent=1 // pred_check_branch
      %11 = sbr.rel (0) target = $region5
    $region4: #{tpu_custom_call.1} parent=1 // pred_region
      %s13 = ssub.s32 512, 512
      %14 = vsyncadd [#allocation3], %s13
      %s15 = sshll.u32 [#allocation2], 4
      %s16 = int_to_ptr.vmem [resolvable:$true] %s15
      %21 = dma.hbm_to_vmem [thread:$0]  %s0, 512, %s16, [#allocation3], 128, 128, 8
    $region5: #{tpu_custom_call.1} parent=1 // pred_fallthru
      _
    // Predicated region
    $region6: #{tpu_custom_call.1} parent=1 // pred_check
      _
    $region7: #{tpu_custom_call.1} parent=1 // pred_check_branch
      %23 = sbr.rel (0) target = $region9
    $region8: #{tpu_custom_call.1} parent=1 // pred_region
      %s25 = ssub.s32 512, 512
      %26 = vsyncadd [#allocation6], %s25
      %s27 = sshll.u32 [#allocation5], 4
      %s28 = int_to_ptr.vmem [resolvable:$true] %s27
      %33 = dma.hbm_to_vmem [thread:$0]  %s1, 512, %s28, [#allocation6], 128, 128, 8
    $region9: #{tpu_custom_call.1} parent=1 // pred_fallthru
      _
    // Predicated region
    $region10: #{tpu_custom_call.1} parent=1 // pred_check
      _
    $region11: #{tpu_custom_call.1} parent=1 // pred_check_branch
      %35 = sbr.rel (0) target = $region13
    $region12: #{tpu_custom_call.1} parent=1 // pred_region
      %36 = dma.done [#allocation3], 512
    $region13: #{tpu_custom_call.1} parent=1 // pred_fallthru
      _
    // Predicated region
    $region14: #{tpu_custom_call.1} parent=1 // pred_check
      _
    $region15: #{tpu_custom_call.1} parent=1 // pred_check_branch
      %38 = sbr.rel (0) target = $region17
    $region16: #{tpu_custom_call.1} parent=1 // pred_region
      %39 = dma.done [#allocation6], 512
    $region17: #{tpu_custom_call.1} parent=1 // pred_fallthru
      _
    %v40 = vld [vmem:[#allocation2] sm:$0xff]
    %v41 = vld [vmem:[#allocation2 + $0x8] sm:$0xff]
    %v42 = vld [vmem:[#allocation2 + $0x10] sm:$0xff]
    %v43 = vld [vmem:[#allocation2 + $0x18] sm:$0x1f]
    %v44 = vld [vmem:[#allocation5] sm:$0xff]
    %v45 = vld [vmem:[#allocation5 + $0x8] sm:$0xff]
    %v46 = vld [vmem:[#allocation5 + $0x10] sm:$0xff]
    %v47 = vld [vmem:[#allocation5 + $0x18] sm:$0x1f]
    %v48 = vmul.f32 %v40, %v44
    %v49 = vmul.f32 %v41, %v45
    %v50 = vmul.f32 %v42, %v46
    %v51 = vmul.f32 %v43, %v47
    %v52 = vadd.f32 %v48, %v49
    %v53 = vadd.f32 %v52, %v50
    %vm54 = vcmask 1044480
    %v55 = vsel %vm54, %v51, 0.0
    %v56 = vadd.f32 %v53, %v55
    %v57 = vrot.slane %v56, 4
    %v58 = vadd.f32 %v56, %v57
    %v59 = vrot.slane %v58, 2
    %v60 = vadd.f32 %v58, %v59
    %v61 = vrot.slane %v60, 1
    %v62 = vadd.f32 %v60, %v61
    %v63 = vxor.u32 %v62, 2147483648
    %v64 = vmul.f32 %v63, 1.442695
    %v65 = vpow.pop %v64
    %v66 = vadd.f32 %v65, 1.0
    %v67 = vrcp.pop %v66
    %v68 = vmul.f32 1.0, %v67
    %69 = vst [vmem:[#allocation7] sm:$0x1] %v68
    // Predicated region
    $region18: #{tpu_custom_call.1} parent=1 // pred_check
      _
    $region19: #{tpu_custom_call.1} parent=1 // pred_check_branch
      %71 = sbr.rel (0) target = $region21
    $region20: #{tpu_custom_call.1} parent=1 // pred_region
      %s73 = ssub.s32 16, 16
      %74 = vsyncadd [#allocation4], %s73
      %s76 = sshll.u32 [#allocation7], 4
      %s77 = int_to_ptr.vmem [resolvable:$true] %s76
      %79 = dma.vmem_to_hbm [thread:$0]  %s77, 16, %s2, [#allocation4]
    $region21: #{tpu_custom_call.1} parent=1 // pred_fallthru
      _
    // Predicated region
    $region22: #{tpu_custom_call.1} parent=1 // pred_check
      _
    $region23: #{tpu_custom_call.1} parent=1 // pred_check_branch
      %81 = sbr.rel (0) target = $region25
    $region24: #{tpu_custom_call.1} parent=1 // pred_region
      %82 = dma.done [#allocation4], 16
    $region25: #{tpu_custom_call.1} parent=1 // pred_fallthru
      _
    %83 = vsyncpa [#allocation3], 1
    %84 = vsyncpa [#allocation6], 1
    %85 = vsyncpa [#allocation4], 1

</llo_original>
